<compile_context>
chip_gen: v7x
topology: tpu7x:2x2x1
jax: 0.10.0
libtpu: 0.0.40
codegen_flags: <defaults>
</compile_context>

<pallas_src>
import jax
import jax.numpy as jnp
from jax.experimental import pallas as pl
from jax.experimental.pallas import tpu as pltpu

HIDDEN_SIZE = 64
LANE = 128  # TPU lane width; pad the output feature dim to this


def _round_up(v, m):
    return ((v + m - 1) // m) * m


def _actor_kernel(ma_ref,            # (1,) f32 in SMEM: max_action
                  x_ref,             # (TM, obs_dim) tile of the batch
                  w1_ref, b1_ref,
                  w2_ref, b2_ref,
                  w3_ref, b3_ref,
                  w4_ref, b4_ref,    # last layer zero-padded to LANE outputs
                  out_ref):          # (TM, LANE) lane-dense output tile
    max_action = ma_ref[0]
    # fc1 + relu
    h = jnp.dot(x_ref[...], w1_ref[...], preferred_element_type=jnp.float32) + b1_ref[...]
    h = jnp.maximum(h, 0.0)
    # fc2 + relu
    h = jnp.dot(h, w2_ref[...], preferred_element_type=jnp.float32) + b2_ref[...]
    h = jnp.maximum(h, 0.0)
    # fc3 + relu
    h = jnp.dot(h, w3_ref[...], preferred_element_type=jnp.float32) + b3_ref[...]
    h = jnp.maximum(h, 0.0)
    # action_out + scaled sigmoid (padded lanes hold garbage; sliced off in wrapper)
    logits = jnp.dot(h, w4_ref[...], preferred_element_type=jnp.float32) + b4_ref[...]
    out_ref[...] = max_action * jax.nn.sigmoid(logits)


def actor_forward(x, params, max_action, *, tm=512):
    """x: (B, obs_dim) f32. params: w1..w4 as (in, out), b1..b4 as (1, out)."""
    B, obs_dim = x.shape
    act_dim = params["w4"].shape[1]
    act_pad = _round_up(act_dim, LANE)

    # Tile the batch; clamp the tile so tiny demo batches don't over-pad.
    tm = min(tm, _round_up(max(B, 8), 8))
    b_pad = _round_up(B, tm)
    if b_pad != B:
        x = jnp.pad(x, ((0, b_pad - B), (0, 0)))

    # Zero-pad the last layer along the output-feature (lane) axis so the
    # HBM store is lane-dense (unmasked vst).
    w4 = jnp.pad(params["w4"], ((0, 0), (0, act_pad - act_dim)))
    b4 = jnp.pad(params["b4"], ((0, 0), (0, act_pad - act_dim)))

    ma = jnp.full((1,), max_action, jnp.float32)

    def resident(shape):
        # weights/biases: same block for every grid step -> stay in VMEM
        return pl.BlockSpec(shape, lambda i: tuple(0 for _ in shape))

    in_specs = [
        pl.BlockSpec(memory_space=pltpu.MemorySpace.SMEM),     # max_action scalar
        pl.BlockSpec((tm, obs_dim), lambda i: (i, 0)),         # streamed x tile
        resident(params["w1"].shape), resident(params["b1"].shape),
        resident(params["w2"].shape), resident(params["b2"].shape),
        resident(params["w3"].shape), resident(params["b3"].shape),
        resident(w4.shape), resident(b4.shape),
    ]
    out_spec = pl.BlockSpec((tm, act_pad), lambda i: (i, 0))

    out = pl.pallas_call(
        _actor_kernel,
        out_shape=jax.ShapeDtypeStruct((b_pad, act_pad), jnp.float32),
        grid=(b_pad // tm,),
        in_specs=in_specs,
        out_specs=out_spec,
        compiler_params=pltpu.CompilerParams(
            dimension_semantics=("parallel",)),
    )(ma, x,
      params["w1"], params["b1"],
      params["w2"], params["b2"],
      params["w3"], params["b3"],
      w4, b4)

    return out[:B, :act_dim]


def init_params(key, obs_dim, act_dim):
    """PyTorch-style uniform(-1/sqrt(fan_in), 1/sqrt(fan_in)) init.
    Weights stored pre-transposed as (in, out)."""
    dims = [(obs_dim, HIDDEN_SIZE),
            (HIDDEN_SIZE, HIDDEN_SIZE),
            (HIDDEN_SIZE, HIDDEN_SIZE),
            (HIDDEN_SIZE, act_dim)]
    params = {}
    for i, (fan_in, fan_out) in enumerate(dims, start=1):
        key, kw, kb = jax.random.split(key, 3)
        bound = 1.0 / jnp.sqrt(jnp.float32(fan_in))
        params[f"w{i}"] = jax.random.uniform(kw, (fan_in, fan_out), jnp.float32,
                                             minval=-bound, maxval=bound)
        params[f"b{i}"] = jax.random.uniform(kb, (1, fan_out), jnp.float32,
                                             minval=-bound, maxval=bound)
    return params


def _reference(x, params, max_action):
    h = jnp.maximum(x @ params["w1"] + params["b1"], 0.0)
    h = jnp.maximum(h @ params["w2"] + params["b2"], 0.0)
    h = jnp.maximum(h @ params["w3"] + params["b3"], 0.0)
    return max_action * jax.nn.sigmoid(h @ params["w4"] + params["b4"])


if __name__ == "__main__":
    B, OBS_DIM, ACT_DIM = 2, 16, 4     # small shapes consistent with args.obs_shape / action_shape
    MAX_ACTION = 1.0                   # args.high_action

    key = jax.random.PRNGKey(0)
    key, kx, kp = jax.random.split(key, 3)
    x = jax.random.normal(kx, (B, OBS_DIM), jnp.float32)
    params = init_params(kp, OBS_DIM, ACT_DIM)

    out = actor_forward(x, params, MAX_ACTION)
    out = jax.block_until_ready(out)

    ref = _reference(x, params, MAX_ACTION)
    assert out.shape == (B, ACT_DIM)
    assert jnp.allclose(out, ref, atol=1e-5, rtol=1e-5)

    print("KERNEL_OK")
</pallas_src>

<mosaic_0001>
module attributes {stable_mosaic.version = 11 : i64} {
  func.func @_actor_kernel(%arg0: i32, %arg1: memref<1xf32, #tpu.memory_space<smem>>, %arg2: memref<8x16xf32, #tpu.memory_space<vmem>>, %arg3: memref<16x64xf32, #tpu.memory_space<vmem>>, %arg4: memref<1x64xf32, #tpu.memory_space<vmem>>, %arg5: memref<64x64xf32, #tpu.memory_space<vmem>>, %arg6: memref<1x64xf32, #tpu.memory_space<vmem>>, %arg7: memref<64x64xf32, #tpu.memory_space<vmem>>, %arg8: memref<1x64xf32, #tpu.memory_space<vmem>>, %arg9: memref<64x128xf32, #tpu.memory_space<vmem>>, %arg10: memref<1x128xf32, #tpu.memory_space<vmem>>, %arg11: memref<8x128xf32, #tpu.memory_space<vmem>>) attributes {dimension_semantics = [#tpu.dimension_semantics<parallel>], iteration_bounds = array<i64: 1>, scalar_prefetch = 0 : i64, scratch_operands = 0 : i64, tpu.core_type = #tpu.core_type<tc>, window_params = [{transform_indices = @transform_0, window_bounds = array<i64: 1>}, {transform_indices = @transform_1, window_bounds = array<i64: 8, 16>}, {pipeline_mode = #tpu.pipeline_mode<synchronous>, transform_indices = @transform_2, window_bounds = array<i64: 16, 64>}, {pipeline_mode = #tpu.pipeline_mode<synchronous>, transform_indices = @transform_3, window_bounds = array<i64: 1, 64>}, {pipeline_mode = #tpu.pipeline_mode<synchronous>, transform_indices = @transform_4, window_bounds = array<i64: 64, 64>}, {pipeline_mode = #tpu.pipeline_mode<synchronous>, transform_indices = @transform_5, window_bounds = array<i64: 1, 64>}, {pipeline_mode = #tpu.pipeline_mode<synchronous>, transform_indices = @transform_6, window_bounds = array<i64: 64, 64>}, {pipeline_mode = #tpu.pipeline_mode<synchronous>, transform_indices = @transform_7, window_bounds = array<i64: 1, 64>}, {pipeline_mode = #tpu.pipeline_mode<synchronous>, transform_indices = @transform_8, window_bounds = array<i64: 64, 128>}, {pipeline_mode = #tpu.pipeline_mode<synchronous>, transform_indices = @transform_9, window_bounds = array<i64: 1, 128>}, {transform_indices = @transform_10, window_bounds = array<i64: 8, 128>}]} {
    %c0 = arith.constant 0 : index
    %0 = memref.load %arg1[%c0] : memref<1xf32, #tpu.memory_space<smem>>
    %c0_0 = arith.constant 0 : index
    %c0_1 = arith.constant 0 : index
    %1 = vector.load %arg2[%c0_0, %c0_1] : memref<8x16xf32, #tpu.memory_space<vmem>>, vector<8x16xf32>
    %c0_2 = arith.constant 0 : index
    %c0_3 = arith.constant 0 : index
    %2 = vector.load %arg3[%c0_2, %c0_3] : memref<16x64xf32, #tpu.memory_space<vmem>>, vector<16x64xf32>
    %cst = arith.constant dense<0.000000e+00> : vector<8x64xf32>
    %3 = tpu.matmul %1, %2, %cst {dimension_numbers = #tpu.dot_dimension_numbers<[1], [0], [0], [1], [0, 0, 1, 1], [], []>} : vector<8x16xf32>, vector<16x64xf32>, vector<8x64xf32> -> vector<8x64xf32>
    %c0_4 = arith.constant 0 : index
    %c0_5 = arith.constant 0 : index
    %4 = vector.load %arg4[%c0_4, %c0_5] : memref<1x64xf32, #tpu.memory_space<vmem>>, vector<1x64xf32>
    %5 = vector.broadcast %4 : vector<1x64xf32> to vector<8x64xf32>
    %6 = arith.addf %3, %5 : vector<8x64xf32>
    %cst_6 = arith.constant 0.000000e+00 : f32
    %7 = vector.broadcast %cst_6 : f32 to vector<8x64xf32>
    %8 = arith.maximumf %6, %7 : vector<8x64xf32>
    %c0_7 = arith.constant 0 : index
    %c0_8 = arith.constant 0 : index
    %9 = vector.load %arg5[%c0_7, %c0_8] : memref<64x64xf32, #tpu.memory_space<vmem>>, vector<64x64xf32>
    %cst_9 = arith.constant dense<0.000000e+00> : vector<8x64xf32>
    %10 = tpu.matmul %8, %9, %cst_9 {dimension_numbers = #tpu.dot_dimension_numbers<[1], [0], [0], [1], [0, 0, 1, 1], [], []>} : vector<8x64xf32>, vector<64x64xf32>, vector<8x64xf32> -> vector<8x64xf32>
    %c0_10 = arith.constant 0 : index
    %c0_11 = arith.constant 0 : index
    %11 = vector.load %arg6[%c0_10, %c0_11] : memref<1x64xf32, #tpu.memory_space<vmem>>, vector<1x64xf32>
    %12 = vector.broadcast %11 : vector<1x64xf32> to vector<8x64xf32>
    %13 = arith.addf %10, %12 : vector<8x64xf32>
    %cst_12 = arith.constant 0.000000e+00 : f32
    %14 = vector.broadcast %cst_12 : f32 to vector<8x64xf32>
    %15 = arith.maximumf %13, %14 : vector<8x64xf32>
    %c0_13 = arith.constant 0 : index
    %c0_14 = arith.constant 0 : index
    %16 = vector.load %arg7[%c0_13, %c0_14] : memref<64x64xf32, #tpu.memory_space<vmem>>, vector<64x64xf32>
    %cst_15 = arith.constant dense<0.000000e+00> : vector<8x64xf32>
    %17 = tpu.matmul %15, %16, %cst_15 {dimension_numbers = #tpu.dot_dimension_numbers<[1], [0], [0], [1], [0, 0, 1, 1], [], []>} : vector<8x64xf32>, vector<64x64xf32>, vector<8x64xf32> -> vector<8x64xf32>
    %c0_16 = arith.constant 0 : index
    %c0_17 = arith.constant 0 : index
    %18 = vector.load %arg8[%c0_16, %c0_17] : memref<1x64xf32, #tpu.memory_space<vmem>>, vector<1x64xf32>
    %19 = vector.broadcast %18 : vector<1x64xf32> to vector<8x64xf32>
    %20 = arith.addf %17, %19 : vector<8x64xf32>
    %cst_18 = arith.constant 0.000000e+00 : f32
    %21 = vector.broadcast %cst_18 : f32 to vector<8x64xf32>
    %22 = arith.maximumf %20, %21 : vector<8x64xf32>
    %c0_19 = arith.constant 0 : index
    %c0_20 = arith.constant 0 : index
    %23 = vector.load %arg9[%c0_19, %c0_20] : memref<64x128xf32, #tpu.memory_space<vmem>>, vector<64x128xf32>
    %cst_21 = arith.constant dense<0.000000e+00> : vector<8x128xf32>
    %24 = tpu.matmul %22, %23, %cst_21 {dimension_numbers = #tpu.dot_dimension_numbers<[1], [0], [0], [1], [0, 0, 1, 1], [], []>} : vector<8x64xf32>, vector<64x128xf32>, vector<8x128xf32> -> vector<8x128xf32>
    %c0_22 = arith.constant 0 : index
    %c0_23 = arith.constant 0 : index
    %25 = vector.load %arg10[%c0_22, %c0_23] : memref<1x128xf32, #tpu.memory_space<vmem>>, vector<1x128xf32>
    %26 = vector.broadcast %25 : vector<1x128xf32> to vector<8x128xf32>
    %27 = arith.addf %24, %26 : vector<8x128xf32>
    %28 = arith.negf %27 : vector<8x128xf32>
    %29 = math.exp %28 : vector<8x128xf32>
    %cst_24 = arith.constant 1.000000e+00 : f32
    %30 = vector.broadcast %cst_24 : f32 to vector<8x128xf32>
    %31 = arith.addf %30, %29 : vector<8x128xf32>
    %32 = arith.divf %30, %31 : vector<8x128xf32>
    %33 = vector.broadcast %0 : f32 to vector<8x128xf32>
    %34 = arith.mulf %33, %32 : vector<8x128xf32>
    %c0_25 = arith.constant 0 : index
    %c0_26 = arith.constant 0 : index
    %35 = vector.load %arg11[%c0_25, %c0_26] : memref<8x128xf32, #tpu.memory_space<vmem>>, vector<8x128xf32>
    tpu.vector_store %arg11[%c0_25, %c0_26], %34 {strides = array<i32>} : memref<8x128xf32, #tpu.memory_space<vmem>>, vector<8x128xf32>,
    return
  }
  func.func @transform_0(%arg0: i32) -> i32 {
    %c0_i32 = arith.constant 0 : i32
    %c0_i32_0 = arith.constant 0 : i32
    return %c0_i32 : i32
  }
  func.func @transform_1(%arg0: i32) -> (i32, i32) {
    %c0_i32 = arith.constant 0 : i32
    %c0_i32_0 = arith.constant 0 : i32
    return %arg0, %c0_i32 : i32, i32
  }
  func.func @transform_2(%arg0: i32) -> (i32, i32) {
    %c0_i32 = arith.constant 0 : i32
    %c0_i32_0 = arith.constant 0 : i32
    %c0_i32_1 = arith.constant 0 : i32
    return %c0_i32, %c0_i32_0 : i32, i32
  }
  func.func @transform_3(%arg0: i32) -> (i32, i32) {
    %c0_i32 = arith.constant 0 : i32
    %c0_i32_0 = arith.constant 0 : i32
    %c0_i32_1 = arith.constant 0 : i32
    return %c0_i32, %c0_i32_0 : i32, i32
  }
  func.func @transform_4(%arg0: i32) -> (i32, i32) {
    %c0_i32 = arith.constant 0 : i32
    %c0_i32_0 = arith.constant 0 : i32
    %c0_i32_1 = arith.constant 0 : i32
    return %c0_i32, %c0_i32_0 : i32, i32
  }
  func.func @transform_5(%arg0: i32) -> (i32, i32) {
    %c0_i32 = arith.constant 0 : i32
    %c0_i32_0 = arith.constant 0 : i32
    %c0_i32_1 = arith.constant 0 : i32
    return %c0_i32, %c0_i32_0 : i32, i32
  }
  func.func @transform_6(%arg0: i32) -> (i32, i32) {
    %c0_i32 = arith.constant 0 : i32
    %c0_i32_0 = arith.constant 0 : i32
    %c0_i32_1 = arith.constant 0 : i32
    return %c0_i32, %c0_i32_0 : i32, i32
  }
  func.func @transform_7(%arg0: i32) -> (i32, i32) {
    %c0_i32 = arith.constant 0 : i32
    %c0_i32_0 = arith.constant 0 : i32
    %c0_i32_1 = arith.constant 0 : i32
    return %c0_i32, %c0_i32_0 : i32, i32
  }
  func.func @transform_8(%arg0: i32) -> (i32, i32) {
    %c0_i32 = arith.constant 0 : i32
    %c0_i32_0 = arith.constant 0 : i32
    %c0_i32_1 = arith.constant 0 : i32
    return %c0_i32, %c0_i32_0 : i32, i32
  }
  func.func @transform_9(%arg0: i32) -> (i32, i32) {
    %c0_i32 = arith.constant 0 : i32
    %c0_i32_0 = arith.constant 0 : i32
    %c0_i32_1 = arith.constant 0 : i32
    return %c0_i32, %c0_i32_0 : i32, i32
  }
  func.func @transform_10(%arg0: i32) -> (i32, i32) {
    %c0_i32 = arith.constant 0 : i32
    %c0_i32_0 = arith.constant 0 : i32
    return %arg0, %c0_i32 : i32, i32
  }
}

</mosaic_0001>

<llo_original>
// kernel: tpu_custom_call.1
$region0: #{tpu_custom_call.1}
  #allocation0 [shape = 'u32[]', space=smem, size = 0x4, offset = 0x4, fixed_abs, tag = 'smem constant byte address 0x4 - core index']
  #allocation1 [shape = 'u32[144,128]{1,0:T(1,128)}', space=vmem, size = 0x12000, scoped, tag = 'internal scratch']
  #allocation2 [shape = 'f32[1]{0:T(128)S(6)}', space=smem, size = 0x200, scoped, tag = 'scoped memory for tpu_custom_call.1']
  %s0 = inlined_call_operand.<no memory space> [shape: f32[1], index: 0, kind: input, shape index: {}]
  %s1 = inlined_call_operand.hbm [shape: f32[8,16], index: 1, kind: input, shape index: {}]
  %s2 = inlined_call_operand.hbm [shape: f32[16,64], index: 2, kind: input, shape index: {}]
  %s3 = inlined_call_operand.vmem [shape: f32[1,64], index: 3, kind: input, shape index: {}]
  %s4 = inlined_call_operand.hbm [shape: f32[64,64], index: 4, kind: input, shape index: {}]
  %s5 = inlined_call_operand.vmem [shape: f32[1,64], index: 5, kind: input, shape index: {}]
  %s6 = inlined_call_operand.hbm [shape: f32[64,64], index: 6, kind: input, shape index: {}]
  %s7 = inlined_call_operand.vmem [shape: f32[1,64], index: 7, kind: input, shape index: {}]
  %s8 = inlined_call_operand.hbm [shape: f32[64,128], index: 8, kind: input, shape index: {}]
  %s9 = inlined_call_operand.vmem [shape: f32[1,128], index: 9, kind: input, shape index: {}]
  %s10 = inlined_call_operand.hbm [shape: f32[8,128], index: 10, kind: output, shape index: {}]
  %s11 = sld [smem:[#allocation0]]
  $region70: #{tpu_custom_call.1} parent=0
    _
  %s13 = ssub.s32 1, %s11
  %s14 = scalar_select 0, %s13, %s11
  %15 = sst [smem:[#allocation2]] %s0
  $region1: #{tpu_custom_call.1} parent=0
    #allocation3 [shape = 'u8[4096]{0}', space=vmem, size = 0x1000, scoped, tag = 'input window, operand 1, single buffered']
    #allocation4 [shape = 's32[1]{0}', space=sflag, size = 0x4, scoped, tag = 'scoped memory for tpu_custom_call.1']
    #allocation5 [shape = 's32[1]{0}', space=sflag, size = 0x4, scoped, tag = 'scoped memory for tpu_custom_call.1']
    #allocation6 [shape = 'u8[8192]{0}', space=vmem, size = 0x2000, scoped, tag = 'input window, operand 2, single buffered']
    #allocation7 [shape = 's32[1]{0}', space=sflag, size = 0x4, scoped, tag = 'scoped memory for tpu_custom_call.1']
    #allocation8 [shape = 'u8[32768]{0}', space=vmem, size = 0x8000, scoped, tag = 'input window, operand 4, single buffered']
    #allocation9 [shape = 'u8[32768]{0}', space=vmem, size = 0x8000, scoped, tag = 'input window, operand 6, single buffered']
    #allocation10 [shape = 's32[1]{0}', space=sflag, size = 0x4, scoped, tag = 'scoped memory for tpu_custom_call.1']
    #allocation11 [shape = 'u8[32768]{0}', space=vmem, size = 0x8000, scoped, tag = 'input window, operand 8, single buffered']
    #allocation12 [shape = 'u8[4096]{0}', space=vmem, size = 0x1000, scoped, tag = 'output window, operand 0, single buffered']
    %16 = vsyncpa [#allocation4], 0
    %17 = vsyncpa [#allocation7], 0
    %18 = vsyncpa [#allocation10], 0
    %19 = vsyncpa [#allocation5], 0
    // Predicated region
    $region2: #{tpu_custom_call.1} parent=1 // pred_check
      _
    $region3: #{tpu_custom_call.1} parent=1 // pred_check_branch
      %21 = sbr.rel (0) target = $region5
    $region4: #{tpu_custom_call.1} parent=1 // pred_region
      _
    $region5: #{tpu_custom_call.1} parent=1 // pred_fallthru
      _
    // Predicated region
    $region6: #{tpu_custom_call.1} parent=1 // pred_check
      _
    $region7: #{tpu_custom_call.1} parent=1 // pred_check_branch
      %23 = sbr.rel (0) target = $region9
    $region8: #{tpu_custom_call.1} parent=1 // pred_region
      %s25 = ssub.s32 128, 128
      %26 = vsyncadd [#allocation4], %s25
      %s28 = sshll.u32 [#allocation3], 4
      %s29 = int_to_ptr.vmem [resolvable:$true] %s28
      %31 = dma.hbm_to_vmem [thread:$0]  %s1, 128, %s29, [#allocation4]
    $region9: #{tpu_custom_call.1} parent=1 // pred_fallthru
      _
    // Predicated region
    $region10: #{tpu_custom_call.1} parent=1 // pred_check
      _
    $region11: #{tpu_custom_call.1} parent=1 // pred_check_branch
      %33 = sbr.rel (0) target = $region13
    $region12: #{tpu_custom_call.1} parent=1 // pred_region
      %s35 = ssub.s32 256, 256
      %36 = vsyncadd [#allocation7], %s35
      %s37 = sshll.u32 [#allocation6], 4
      %s38 = int_to_ptr.vmem [resolvable:$true] %s37
      %43 = dma.hbm_to_vmem [thread:$0]  %s2, 256, %s38, [#allocation7], 128, 128, 8
    $region13: #{tpu_custom_call.1} parent=1 // pred_fallthru
      _
    // Predicated region
    $region14: #{tpu_custom_call.1} parent=1 // pred_check
      _
    $region15: #{tpu_custom_call.1} parent=1 // pred_check_branch
      %45 = sbr.rel (0) target = $region17
    $region16: #{tpu_custom_call.1} parent=1 // pred_region
      _
    $region17: #{tpu_custom_call.1} parent=1 // pred_fallthru
      _
    // Predicated region
    $region18: #{tpu_custom_call.1} parent=1 // pred_check
      _
    $region19: #{tpu_custom_call.1} parent=1 // pred_check_branch
      %47 = sbr.rel (0) target = $region21
    $region20: #{tpu_custom_call.1} parent=1 // pred_region
      %s49 = ssub.s32 1024, 1024
      %50 = vsyncadd [#allocation7], %s49
      %s51 = sshll.u32 [#allocation8], 4
      %s52 = int_to_ptr.vmem [resolvable:$true] %s51
      %57 = dma.hbm_to_vmem [thread:$0]  %s4, 1024, %s52, [#allocation7], 128, 128, 8
    $region21: #{tpu_custom_call.1} parent=1 // pred_fallthru
      _
    // Predicated region
    $region22: #{tpu_custom_call.1} parent=1 // pred_check
      _
    $region23: #{tpu_custom_call.1} parent=1 // pred_check_branch
      %59 = sbr.rel (0) target = $region25
    $region24: #{tpu_custom_call.1} parent=1 // pred_region
      _
    $region25: #{tpu_custom_call.1} parent=1 // pred_fallthru
      _
    // Predicated region
    $region26: #{tpu_custom_call.1} parent=1 // pred_check
      _
    $region27: #{tpu_custom_call.1} parent=1 // pred_check_branch
      %61 = sbr.rel (0) target = $region29
    $region28: #{tpu_custom_call.1} parent=1 // pred_region
      %s63 = ssub.s32 1024, 1024
      %64 = vsyncadd [#allocation10], %s63
      %s65 = sshll.u32 [#allocation9], 4
      %s66 = int_to_ptr.vmem [resolvable:$true] %s65
      %71 = dma.hbm_to_vmem [thread:$0]  %s6, 1024, %s66, [#allocation10], 128, 128, 8
    $region29: #{tpu_custom_call.1} parent=1 // pred_fallthru
      _
    // Predicated region
    $region30: #{tpu_custom_call.1} parent=1 // pred_check
      _
    $region31: #{tpu_custom_call.1} parent=1 // pred_check_branch
      %73 = sbr.rel (0) target = $region33
    $region32: #{tpu_custom_call.1} parent=1 // pred_region
      _
    $region33: #{tpu_custom_call.1} parent=1 // pred_fallthru
      _
    // Predicated region
    $region34: #{tpu_custom_call.1} parent=1 // pred_check
      _
    $region35: #{tpu_custom_call.1} parent=1 // pred_check_branch
      %75 = sbr.rel (0) target = $region37
    $region36: #{tpu_custom_call.1} parent=1 // pred_region
      %s77 = ssub.s32 1024, 1024
      %78 = vsyncadd [#allocation10], %s77
      %s79 = sshll.u32 [#allocation11], 4
      %s80 = int_to_ptr.vmem [resolvable:$true] %s79
      %85 = dma.hbm_to_vmem [thread:$0]  %s8, 1024, %s80, [#allocation10], 128, 128, 8
    $region37: #{tpu_custom_call.1} parent=1 // pred_fallthru
      _
    // Predicated region
    $region38: #{tpu_custom_call.1} parent=1 // pred_check
      _
    $region39: #{tpu_custom_call.1} parent=1 // pred_check_branch
      %87 = sbr.rel (0) target = $region41
    $region40: #{tpu_custom_call.1} parent=1 // pred_region
      _
    $region41: #{tpu_custom_call.1} parent=1 // pred_fallthru
      _
    // Predicated region
    $region42: #{tpu_custom_call.1} parent=1 // pred_check
      _
    $region43: #{tpu_custom_call.1} parent=1 // pred_check_branch
      %89 = sbr.rel (0) target = $region45
    $region44: #{tpu_custom_call.1} parent=1 // pred_region
      %90 = dma.done [#allocation4], 128
    $region45: #{tpu_custom_call.1} parent=1 // pred_fallthru
      _
    // Predicated region
    $region46: #{tpu_custom_call.1} parent=1 // pred_check
      _
    $region47: #{tpu_custom_call.1} parent=1 // pred_check_branch
      %92 = sbr.rel (0) target = $region49
    $region48: #{tpu_custom_call.1} parent=1 // pred_region
      %93 = dma.done [#allocation7], 256
    $region49: #{tpu_custom_call.1} parent=1 // pred_fallthru
      _
    // Predicated region
    $region50: #{tpu_custom_call.1} parent=1 // pred_check
      _
    $region51: #{tpu_custom_call.1} parent=1 // pred_check_branch
      %95 = sbr.rel (0) target = $region53
    $region52: #{tpu_custom_call.1} parent=1 // pred_region
      %96 = dma.done [#allocation7], 1024
    $region53: #{tpu_custom_call.1} parent=1 // pred_fallthru
      _
    // Predicated region
    $region54: #{tpu_custom_call.1} parent=1 // pred_check
      _
    $region55: #{tpu_custom_call.1} parent=1 // pred_check_branch
      %98 = sbr.rel (0) target = $region57
    $region56: #{tpu_custom_call.1} parent=1 // pred_region
      %99 = dma.done [#allocation10], 1024
    $region57: #{tpu_custom_call.1} parent=1 // pred_fallthru
      _
    // Predicated region
    $region58: #{tpu_custom_call.1} parent=1 // pred_check
      _
    $region59: #{tpu_custom_call.1} parent=1 // pred_check_branch
      %101 = sbr.rel (0) target = $region61
    $region60: #{tpu_custom_call.1} parent=1 // pred_region
      %102 = dma.done [#allocation10], 1024
    $region61: #{tpu_custom_call.1} parent=1 // pred_fallthru
      _
    %s103 = sld [smem:[#allocation2]]
    %v104 = vld [vmem:[#allocation3] sm:$0xff]
    %v105 = vld [vmem:[#allocation6] sm:$0xff]
    %v106 = vld [vmem:[#allocation6 + $0x8] sm:$0xff]
    %v107 = vld [vmem:[%s3] sm:$0x1]
    %v109 = vlaneseq
    %v110 = vshrl.u32 %v109, 7
    %v111 = vsub.s32 0, %v110
    %v112 = vrot.slane %v107, %v111
    %vm114 = vcmask 130048
    %v116 = vsel %vm114, %v104, 0
    %118 = vmatprep.subr.mxu0 0.0
    %119 = vmatpush1.msra.mxu0 %v105
    %120 = vmatprep.subr.mxu0 0.0
    %121 = vmatpush1.msra.mxu0 %v106
    %122 = vmatprep.subr.mxu0 0.0
    %123 = vmatpush1.msra.mxu0 0.0
    %124 = vmatprep.subr.mxu0 0.0
    %125 = vmatpush1.msra.mxu0 0.0
    %126 = vmatprep.subr.mxu0 0.0
    %127 = vmatpush1.msra.mxu0 0.0
    %128 = vmatprep.subr.mxu0 0.0
    %129 = vmatpush1.msra.mxu0 0.0
    %130 = vmatprep.subr.mxu0 0.0
    %131 = vmatpush1.msra.mxu0 0.0
    %132 = vmatprep.subr.mxu0 0.0
    %133 = vmatpush1.msra.mxu0 0.0
    %134 = vmatprep.subr.mxu0 0.0
    %135 = vmatpush1.msra.mxu0 0.0
    %136 = vmatprep.subr.mxu0 0.0
    %137 = vmatpush1.msra.mxu0 0.0
    %138 = vmatprep.subr.mxu0 0.0
    %139 = vmatpush1.msra.mxu0 0.0
    %140 = vmatprep.subr.mxu0 0.0
    %141 = vmatpush1.msra.mxu0 0.0
    %142 = vmatprep.subr.mxu0 0.0
    %143 = vmatpush1.msra.mxu0 0.0
    %144 = vmatprep.subr.mxu0 0.0
    %145 = vmatpush1.msra.mxu0 0.0
    %146 = vmatprep.subr.mxu0 0.0
    %147 = vmatpush1.msra.mxu0 0.0
    %148 = vmatprep.subr.mxu0 0.0
    %149 = vmatpush1.msra.mxu0 0.0
    %150 = vmatprep.subr.mxu0 0.0
    %151 = vmatpush1.msra.mxu0 0.0
    %152 = vmatprep.subr.mxu0 0.0
    %153 = vmatpush1.msra.mxu0 0.0
    %154 = vmatprep.subr.mxu0 0.0
    %155 = vmatpush1.msra.mxu0 0.0
    %156 = vmatprep.subr.mxu0 0.0
    %157 = vmatpush1.msra.mxu0 0.0
    %158 = vmatprep.subr.mxu0 0.0
    %159 = vmatpush1.msra.mxu0 0.0
    %160 = vmatprep.subr.mxu0 0.0
    %161 = vmatpush1.msra.mxu0 0.0
    %162 = vmatprep.subr.mxu0 0.0
    %163 = vmatpush1.msra.mxu0 0.0
    %164 = vmatprep.subr.mxu0 0.0
    %165 = vmatpush1.msra.mxu0 0.0
    %166 = vmatprep.subr.mxu0 0.0
    %167 = vmatpush1.msra.mxu0 0.0
    %168 = vmatprep.subr.mxu0 0.0
    %169 = vmatpush1.msra.mxu0 0.0
    %170 = vmatprep.subr.mxu0 0.0
    %171 = vmatpush1.msra.mxu0 0.0
    %172 = vmatprep.subr.mxu0 0.0
    %173 = vmatpush1.msra.mxu0 0.0
    %174 = vmatprep.subr.mxu0 0.0
    %175 = vmatpush1.msra.mxu0 0.0
    %176 = vmatprep.subr.mxu0 0.0
    %177 = vmatpush1.msra.mxu0 0.0
    %178 = vmatprep.subr.mxu0 0.0
    %179 = vmatpush1.msra.mxu0 0.0
    %180 = vmatprep.subr.mxu0 0.0
    %181 = vmatpush1.msra.mxu0 0.0
    %182 = vmatprep.mubr.f32.mxu0 0.0
    %183 = vmatmul.mubr.f32.gmra.mrb[0].mxu0 %v116
    %v184 = vpop.f32.mrb[0].mxu0
    %v185 = vadd.f32 %v112, %v184
    %v186 = vpop.f32.mrb[0].mxu0
    %187 = vdwg.mxu0
    %v188 = vmax.f32 %v185, 0.0
    %v189 = vld [vmem:[#allocation8] sm:$0xff]
    %v190 = vld [vmem:[#allocation8 + $0x8] sm:$0xff]
    %v191 = vld [vmem:[#allocation8 + $0x10] sm:$0xff]
    %v192 = vld [vmem:[#allocation8 + $0x18] sm:$0xff]
    %v193 = vld [vmem:[#allocation8 + $0x20] sm:$0xff]
    %v194 = vld [vmem:[#allocation8 + $0x28] sm:$0xff]
    %v195 = vld [vmem:[#allocation8 + $0x30] sm:$0xff]
    %v196 = vld [vmem:[#allocation8 + $0x38] sm:$0xff]
    %v197 = vld [vmem:[%s5] sm:$0x1]
    %v199 = vlaneseq
    %v200 = vshrl.u32 %v199, 7
    %v201 = vsub.s32 0, %v200
    %v202 = vrot.slane %v197, %v201
    %vm204 = vcmask 523264
    %v206 = vsel %vm204, %v188, 0
    %208 = vmatprep.subr.mxu0 0.0
    %209 = vmatpush1.msra.mxu0 %v189
    %210 = vmatprep.subr.mxu0 0.0
    %211 = vmatpush1.msra.mxu0 %v190
    %212 = vmatprep.subr.mxu0 0.0
    %213 = vmatpush1.msra.mxu0 %v191
    %214 = vmatprep.subr.mxu0 0.0
    %215 = vmatpush1.msra.mxu0 %v192
    %216 = vmatprep.subr.mxu0 0.0
    %217 = vmatpush1.msra.mxu0 %v193
    %218 = vmatprep.subr.mxu0 0.0
    %219 = vmatpush1.msra.mxu0 %v194
    %220 = vmatprep.subr.mxu0 0.0
    %221 = vmatpush1.msra.mxu0 %v195
    %222 = vmatprep.subr.mxu0 0.0
    %223 = vmatpush1.msra.mxu0 %v196
    %224 = vmatprep.subr.mxu0 0.0
    %225 = vmatpush1.msra.mxu0 0.0
    %226 = vmatprep.subr.mxu0 0.0
    %227 = vmatpush1.msra.mxu0 0.0
    %228 = vmatprep.subr.mxu0 0.0
    %229 = vmatpush1.msra.mxu0 0.0
    %230 = vmatprep.subr.mxu0 0.0
    %231 = vmatpush1.msra.mxu0 0.0
    %232 = vmatprep.subr.mxu0 0.0
    %233 = vmatpush1.msra.mxu0 0.0
    %234 = vmatprep.subr.mxu0 0.0
    %235 = vmatpush1.msra.mxu0 0.0
    %236 = vmatprep.subr.mxu0 0.0
    %237 = vmatpush1.msra.mxu0 0.0
    %238 = vmatprep.subr.mxu0 0.0
    %239 = vmatpush1.msra.mxu0 0.0
    %240 = vmatprep.subr.mxu0 0.0
    %241 = vmatpush1.msra.mxu0 0.0
    %242 = vmatprep.subr.mxu0 0.0
    %243 = vmatpush1.msra.mxu0 0.0
    %244 = vmatprep.subr.mxu0 0.0
    %245 = vmatpush1.msra.mxu0 0.0
    %246 = vmatprep.subr.mxu0 0.0
    %247 = vmatpush1.msra.mxu0 0.0
    %248 = vmatprep.subr.mxu0 0.0
    %249 = vmatpush1.msra.mxu0 0.0
    %250 = vmatprep.subr.mxu0 0.0
    %251 = vmatpush1.msra.mxu0 0.0
    %252 = vmatprep.subr.mxu0 0.0
    %253 = vmatpush1.msra.mxu0 0.0
    %254 = vmatprep.subr.mxu0 0.0
    %255 = vmatpush1.msra.mxu0 0.0
    %256 = vmatprep.subr.mxu0 0.0
    %257 = vmatpush1.msra.mxu0 0.0
    %258 = vmatprep.subr.mxu0 0.0
    %259 = vmatpush1.msra.mxu0 0.0
    %260 = vmatprep.subr.mxu0 0.0
    %261 = vmatpush1.msra.mxu0 0.0
    %262 = vmatprep.subr.mxu0 0.0
    %263 = vmatpush1.msra.mxu0 0.0
    %264 = vmatprep.subr.mxu0 0.0
    %265 = vmatpush1.msra.mxu0 0.0
    %266 = vmatprep.subr.mxu0 0.0
    %267 = vmatpush1.msra.mxu0 0.0
    %268 = vmatprep.subr.mxu0 0.0
    %269 = vmatpush1.msra.mxu0 0.0
    %270 = vmatprep.subr.mxu0 0.0
    %271 = vmatpush1.msra.mxu0 0.0
    %272 = vmatprep.mubr.f32.mxu0 0.0
    %273 = vmatmul.mubr.f32.gmra.mrb[0].mxu0 %v206
    %v274 = vpop.f32.mrb[0].mxu0
    %v275 = vadd.f32 %v202, %v274
    %v276 = vpop.f32.mrb[0].mxu0
    %277 = vdwg.mxu0
    %v278 = vmax.f32 %v275, 0.0
    %v279 = vld [vmem:[#allocation9] sm:$0xff]
    %v280 = vld [vmem:[#allocation9 + $0x8] sm:$0xff]
    %v281 = vld [vmem:[#allocation9 + $0x10] sm:$0xff]
    %v282 = vld [vmem:[#allocation9 + $0x18] sm:$0xff]
    %v283 = vld [vmem:[#allocation9 + $0x20] sm:$0xff]
    %v284 = vld [vmem:[#allocation9 + $0x28] sm:$0xff]
    %v285 = vld [vmem:[#allocation9 + $0x30] sm:$0xff]
    %v286 = vld [vmem:[#allocation9 + $0x38] sm:$0xff]
    %v287 = vld [vmem:[%s7] sm:$0x1]
    %v289 = vlaneseq
    %v290 = vshrl.u32 %v289, 7
    %v291 = vsub.s32 0, %v290
    %v292 = vrot.slane %v287, %v291
    %v295 = vsel %vm204, %v278, 0
    %297 = vmatprep.subr.mxu0 0.0
    %298 = vmatpush1.msra.mxu0 %v279
    %299 = vmatprep.subr.mxu0 0.0
    %300 = vmatpush1.msra.mxu0 %v280
    %301 = vmatprep.subr.mxu0 0.0
    %302 = vmatpush1.msra.mxu0 %v281
    %303 = vmatprep.subr.mxu0 0.0
    %304 = vmatpush1.msra.mxu0 %v282
    %305 = vmatprep.subr.mxu0 0.0
    %306 = vmatpush1.msra.mxu0 %v283
    %307 = vmatprep.subr.mxu0 0.0
    %308 = vmatpush1.msra.mxu0 %v284
    %309 = vmatprep.subr.mxu0 0.0
    %310 = vmatpush1.msra.mxu0 %v285
    %311 = vmatprep.subr.mxu0 0.0
    %312 = vmatpush1.msra.mxu0 %v286
    %313 = vmatprep.subr.mxu0 0.0
    %314 = vmatpush1.msra.mxu0 0.0
    %315 = vmatprep.subr.mxu0 0.0
    %316 = vmatpush1.msra.mxu0 0.0
    %317 = vmatprep.subr.mxu0 0.0
    %318 = vmatpush1.msra.mxu0 0.0
    %319 = vmatprep.subr.mxu0 0.0
    %320 = vmatpush1.msra.mxu0 0.0
    %321 = vmatprep.subr.mxu0 0.0
    %322 = vmatpush1.msra.mxu0 0.0
    %323 = vmatprep.subr.mxu0 0.0
    %324 = vmatpush1.msra.mxu0 0.0
    %325 = vmatprep.subr.mxu0 0.0
    %326 = vmatpush1.msra.mxu0 0.0
    %327 = vmatprep.subr.mxu0 0.0
    %328 = vmatpush1.msra.mxu0 0.0
    %329 = vmatprep.subr.mxu0 0.0
    %330 = vmatpush1.msra.mxu0 0.0
    %331 = vmatprep.subr.mxu0 0.0
    %332 = vmatpush1.msra.mxu0 0.0
    %333 = vmatprep.subr.mxu0 0.0
    %334 = vmatpush1.msra.mxu0 0.0
    %335 = vmatprep.subr.mxu0 0.0
    %336 = vmatpush1.msra.mxu0 0.0
    %337 = vmatprep.subr.mxu0 0.0
    %338 = vmatpush1.msra.mxu0 0.0
    %339 = vmatprep.subr.mxu0 0.0
    %340 = vmatpush1.msra.mxu0 0.0
    %341 = vmatprep.subr.mxu0 0.0
    %342 = vmatpush1.msra.mxu0 0.0
    %343 = vmatprep.subr.mxu0 0.0
    %344 = vmatpush1.msra.mxu0 0.0
    %345 = vmatprep.subr.mxu0 0.0
    %346 = vmatpush1.msra.mxu0 0.0
    %347 = vmatprep.subr.mxu0 0.0
    %348 = vmatpush1.msra.mxu0 0.0
    %349 = vmatprep.subr.mxu0 0.0
    %350 = vmatpush1.msra.mxu0 0.0
    %351 = vmatprep.subr.mxu0 0.0
    %352 = vmatpush1.msra.mxu0 0.0
    %353 = vmatprep.subr.mxu0 0.0
    %354 = vmatpush1.msra.mxu0 0.0
    %355 = vmatprep.subr.mxu0 0.0
    %356 = vmatpush1.msra.mxu0 0.0
    %357 = vmatprep.subr.mxu0 0.0
    %358 = vmatpush1.msra.mxu0 0.0
    %359 = vmatprep.subr.mxu0 0.0
    %360 = vmatpush1.msra.mxu0 0.0
    %361 = vmatprep.mubr.f32.mxu0 0.0
    %362 = vmatmul.mubr.f32.gmra.mrb[0].mxu0 %v295
    %v363 = vpop.f32.mrb[0].mxu0
    %v364 = vadd.f32 %v292, %v363
    %v365 = vpop.f32.mrb[0].mxu0
    %366 = vdwg.mxu0
    %v367 = vmax.f32 %v364, 0.0
    %v368 = vld [vmem:[#allocation11] sm:$0xff]
    %v369 = vld [vmem:[#allocation11 + $0x8] sm:$0xff]
    %v370 = vld [vmem:[#allocation11 + $0x10] sm:$0xff]
    %v371 = vld [vmem:[#allocation11 + $0x18] sm:$0xff]
    %v372 = vld [vmem:[#allocation11 + $0x20] sm:$0xff]
    %v373 = vld [vmem:[#allocation11 + $0x28] sm:$0xff]
    %v374 = vld [vmem:[#allocation11 + $0x30] sm:$0xff]
    %v375 = vld [vmem:[#allocation11 + $0x38] sm:$0xff]
    %v376 = vld [vmem:[%s9] sm:$0x1]
    %v378 = vlaneseq
    %v379 = vshrl.u32 %v378, 7
    %v380 = vsub.s32 0, %v379
    %v381 = vrot.slane %v376, %v380
    %v384 = vsel %vm204, %v367, 0
    %386 = vmatprep.subr.mxu0 0.0
    %387 = vmatpush1.msra.mxu0 %v368
    %388 = vmatprep.subr.mxu0 0.0
    %389 = vmatpush1.msra.mxu0 %v369
    %390 = vmatprep.subr.mxu0 0.0
    %391 = vmatpush1.msra.mxu0 %v370
    %392 = vmatprep.subr.mxu0 0.0
    %393 = vmatpush1.msra.mxu0 %v371
    %394 = vmatprep.subr.mxu0 0.0
    %395 = vmatpush1.msra.mxu0 %v372
    %396 = vmatprep.subr.mxu0 0.0
    %397 = vmatpush1.msra.mxu0 %v373
    %398 = vmatprep.subr.mxu0 0.0
    %399 = vmatpush1.msra.mxu0 %v374
    %400 = vmatprep.subr.mxu0 0.0
    %401 = vmatpush1.msra.mxu0 %v375
    %402 = vmatprep.subr.mxu0 0.0
    %403 = vmatpush1.msra.mxu0 0.0
    %404 = vmatprep.subr.mxu0 0.0
    %405 = vmatpush1.msra.mxu0 0.0
    %406 = vmatprep.subr.mxu0 0.0
    %407 = vmatpush1.msra.mxu0 0.0
    %408 = vmatprep.subr.mxu0 0.0
    %409 = vmatpush1.msra.mxu0 0.0
    %410 = vmatprep.subr.mxu0 0.0
    %411 = vmatpush1.msra.mxu0 0.0
    %412 = vmatprep.subr.mxu0 0.0
    %413 = vmatpush1.msra.mxu0 0.0
    %414 = vmatprep.subr.mxu0 0.0
    %415 = vmatpush1.msra.mxu0 0.0
    %416 = vmatprep.subr.mxu0 0.0
    %417 = vmatpush1.msra.mxu0 0.0
    %418 = vmatprep.subr.mxu0 0.0
    %419 = vmatpush1.msra.mxu0 0.0
    %420 = vmatprep.subr.mxu0 0.0
    %421 = vmatpush1.msra.mxu0 0.0
    %422 = vmatprep.subr.mxu0 0.0
    %423 = vmatpush1.msra.mxu0 0.0
    %424 = vmatprep.subr.mxu0 0.0
    %425 = vmatpush1.msra.mxu0 0.0
    %426 = vmatprep.subr.mxu0 0.0
    %427 = vmatpush1.msra.mxu0 0.0
    %428 = vmatprep.subr.mxu0 0.0
    %429 = vmatpush1.msra.mxu0 0.0
    %430 = vmatprep.subr.mxu0 0.0
    %431 = vmatpush1.msra.mxu0 0.0
    %432 = vmatprep.subr.mxu0 0.0
    %433 = vmatpush1.msra.mxu0 0.0
    %434 = vmatprep.subr.mxu0 0.0
    %435 = vmatpush1.msra.mxu0 0.0
    %436 = vmatprep.subr.mxu0 0.0
    %437 = vmatpush1.msra.mxu0 0.0
    %438 = vmatprep.subr.mxu0 0.0
    %439 = vmatpush1.msra.mxu0 0.0
    %440 = vmatprep.subr.mxu0 0.0
    %441 = vmatpush1.msra.mxu0 0.0
    %442 = vmatprep.subr.mxu0 0.0
    %443 = vmatpush1.msra.mxu0 0.0
    %444 = vmatprep.subr.mxu0 0.0
    %445 = vmatpush1.msra.mxu0 0.0
    %446 = vmatprep.subr.mxu0 0.0
    %447 = vmatpush1.msra.mxu0 0.0
    %448 = vmatprep.subr.mxu0 0.0
    %449 = vmatpush1.msra.mxu0 0.0
    %450 = vmatprep.mubr.f32.mxu0 0.0
    %451 = vmatmul.mubr.f32.gmra.mrb[0].mxu0 %v384
    %v452 = vpop.f32.mrb[0].mxu0
    %v453 = vadd.f32 %v381, %v452
    %v454 = vpop.f32.mrb[0].mxu0
    %455 = vdwg.mxu0
    %v456 = vxor.u32 %v453, 2147483648
    %v457 = vmul.f32 %v456, 1.442695
    %v458 = vpow.pop %v457
    %v459 = vadd.f32 %v458, 1.0
    %v460 = vrcp.pop %v459
    %v461 = vmul.f32 1.0, %v460
    %v462 = vstv %s103
    %v463 = vmul.f32 %v462, %v461
    %464 = vst [vmem:[#allocation12] sm:$0xff] %v463
    // Predicated region
    $region62: #{tpu_custom_call.1} parent=1 // pred_check
      _
    $region63: #{tpu_custom_call.1} parent=1 // pred_check_branch
      %466 = sbr.rel (0) target = $region65
    $region64: #{tpu_custom_call.1} parent=1 // pred_region
      %s468 = ssub.s32 128, 128
      %469 = vsyncadd [#allocation5], %s468
      %s471 = sshll.u32 [#allocation12], 4
      %s472 = int_to_ptr.vmem [resolvable:$true] %s471
      %474 = dma.vmem_to_hbm [thread:$0]  %s472, 128, %s10, [#allocation5]
    $region65: #{tpu_custom_call.1} parent=1 // pred_fallthru
      _
    // Predicated region
    $region66: #{tpu_custom_call.1} parent=1 // pred_check
      _
    $region67: #{tpu_custom_call.1} parent=1 // pred_check_branch
      %476 = sbr.rel (0) target = $region69
    $region68: #{tpu_custom_call.1} parent=1 // pred_region
      %477 = dma.done [#allocation5], 128
    $region69: #{tpu_custom_call.1} parent=1 // pred_fallthru
      _
    %478 = vsyncpa [#allocation4], 1
    %479 = vsyncpa [#allocation7], 1
    %480 = vsyncpa [#allocation10], 1
    %481 = vsyncpa [#allocation5], 1

</llo_original>
